<compile_context>
chip_gen: v5e
topology: v5e:2x2
jax: 0.10.0
libtpu: 0.0.40
codegen_flags: <defaults>
</compile_context>

<pallas_src>
import functools

import jax
import jax.numpy as jnp
from jax.experimental import pallas as pl
from jax.experimental.pallas import tpu as pltpu

_LANES = 128
# Per-path block-row caps (f32: rows * 128 * 4 B per buffer).
_QCFS_MAX_ROWS = 8192    # 4 MiB/buffer, 2 streams x 2 buffers = 16 MiB
_SPIKE_MAX_ROWS = 4096   # 2 MiB/buffer, 4 streams x 2 buffers = 16 MiB
_VMEM_LIMIT = 32 * 1024 * 1024


# ----------------------------------------------------------------------------
# Kernels
# ----------------------------------------------------------------------------
def _qcfs_kernel(p_ref, x_ref, o_ref, *, L):
    """T == 0 path: y = floor(clamp(x/thr, 0, 1) * L + 0.5) / L * thr.

    p_ref (SMEM, f32[3]) = [thr, 1/thr, thr/L], precomputed on the host side.
    """
    inv_thr = p_ref[1]
    scale = p_ref[2]
    x = x_ref[...].astype(jnp.float32)
    y = jnp.clip(x * inv_thr, 0.0, 1.0)
    o_ref[...] = (jnp.floor(y * L + 0.5) * scale).astype(o_ref.dtype)


def _if_spike_kernel(thr_ref, x_ref, mem_ref, spk_ref, mem_out_ref):
    """T > 0 path: mem += x; spk = (mem >= thr) * thr; mem -= spk."""
    thr = thr_ref[0]
    mem = mem_ref[...] + x_ref[...].astype(jnp.float32)
    spk = jnp.where(mem >= thr, thr, 0.0)
    spk_ref[...] = spk.astype(spk_ref.dtype)
    mem_out_ref[...] = mem - spk


# ----------------------------------------------------------------------------
# Slab layout helpers (flatten -> (rows, 128) lane-dense)
# ----------------------------------------------------------------------------
def _sublane(dtype):
    # bf16 / f16 pack two rows per sublane -> (16, 128) min tile.
    return 16 if jnp.dtype(dtype).itemsize == 2 else 8


def _num_rows(numel, sub):
    tile = sub * _LANES
    return -(-numel // tile) * sub


def _to_slab(x, sub):
    flat = x.reshape(-1)
    n = flat.shape[0]
    rows = _num_rows(n, sub)
    padded = rows * _LANES
    if padded != n:
        flat = jnp.pad(flat, (0, padded - n))
    return flat.reshape(rows, _LANES)


def _from_slab(slab, numel, shape, dtype=None):
    flat = slab.reshape(-1)
    if flat.shape[0] != numel:
        flat = flat[:numel]
    out = flat.reshape(shape)
    return out if dtype is None else out.astype(dtype)


def _choose_block_rows(rows, cap, sub):
    """>=2 blocks when possible (v7x megacore), capped by VMEM budget."""
    n_blocks = max(2, pl.cdiv(rows, cap))
    br = pl.cdiv(rows, n_blocks)
    br = pl.cdiv(br, sub) * sub
    return max(sub, min(br, cap, rows))


def _row_spec(block_rows):
    return pl.BlockSpec((block_rows, _LANES), lambda i: (i, 0))


def _smem_spec():
    return pl.BlockSpec(memory_space=pltpu.MemorySpace.SMEM)


# ----------------------------------------------------------------------------
# Jitted forward paths
# ----------------------------------------------------------------------------
@functools.partial(jax.jit, static_argnames=("L",))
def _qcfs_forward(thresh, x, *, L):
    sub = _sublane(x.dtype)
    slab = _to_slab(x, sub)
    rows = slab.shape[0]
    block_rows = _choose_block_rows(rows, _QCFS_MAX_ROWS, sub)

    thr = thresh[0].astype(jnp.float32)
    params = jnp.stack([thr, 1.0 / thr, thr / L])   # [thr, 1/thr, thr/L]

    out_slab = pl.pallas_call(
        functools.partial(_qcfs_kernel, L=float(L)),
        out_shape=jax.ShapeDtypeStruct(slab.shape, x.dtype),
        grid_spec=pltpu.PrefetchScalarGridSpec(
            num_scalar_prefetch=0,
            grid=(pl.cdiv(rows, block_rows),),
            in_specs=[_smem_spec(), _row_spec(block_rows)],
            out_specs=_row_spec(block_rows),
        ),
        compiler_params=pltpu.CompilerParams(
            dimension_semantics=("parallel",),
            vmem_limit_bytes=_VMEM_LIMIT),
    )(params, slab)
    return _from_slab(out_slab, x.size, x.shape)


@functools.partial(jax.jit, donate_argnums=(2,))
def _spike_forward(thresh, x, mem_slab):
    sub = _sublane(x.dtype)
    x_slab = _to_slab(x, sub)
    rows = x_slab.shape[0]
    block_rows = _choose_block_rows(rows, _SPIKE_MAX_ROWS, sub)
    spec = _row_spec(block_rows)

    thr = thresh.astype(jnp.float32)

    spk_slab, mem_out = pl.pallas_call(
        _if_spike_kernel,
        out_shape=(jax.ShapeDtypeStruct(x_slab.shape, x.dtype),
                   jax.ShapeDtypeStruct(mem_slab.shape, jnp.float32)),
        grid_spec=pltpu.PrefetchScalarGridSpec(
            num_scalar_prefetch=0,
            grid=(pl.cdiv(rows, block_rows),),
            in_specs=[_smem_spec(), spec, spec],
            out_specs=(spec, spec),
        ),
        # operands: thr=0, x=1, mem=2 ; outputs: spk=0, mem_out=1.
        # mem is updated in place (with donate_argnums) -> no extra HBM copy.
        input_output_aliases={2: 1},
        compiler_params=pltpu.CompilerParams(
            dimension_semantics=("parallel",),
            vmem_limit_bytes=_VMEM_LIMIT),
    )(thr, x_slab, mem_slab)
    return _from_slab(spk_slab, x.size, x.shape), mem_out


# ----------------------------------------------------------------------------
# Module wrapper
# ----------------------------------------------------------------------------
class IF:
    """JAX/Pallas port of the PyTorch IF module (QCFS quantizer / IF neuron).

    Assumes thresh > 0 (as in the reference).  Membrane state is stored
    persistently as an f32 (rows, 128) slab between timesteps.
    """

    def __init__(self, T, L, thresh=8.0):
        self.T = T
        self.L = L
        self.thresh = jnp.array([thresh], dtype=jnp.float32)
        self.mem = None          # f32 slab, spiking-mode state
        self._shape = None
        self._numel = None
        self._dtype = None

    def membrane(self):
        """Membrane potential reshaped back to the activation shape."""
        if self.mem is None:
            return None
        return _from_slab(self.mem, self._numel, self._shape)

    def __call__(self, x):
        if self.T > 0:
            if self.mem is None or self._shape != tuple(x.shape):
                self._shape = tuple(x.shape)
                self._numel = int(x.size)
                self._dtype = x.dtype
                rows = _num_rows(self._numel, _sublane(x.dtype))
                # mem = zeros_like(x) + thr * 0.5, kept in f32 slab form.
                self.mem = (jnp.zeros((rows, _LANES), jnp.float32)
                            + self.thresh[0] * 0.5)
            spk, self.mem = _spike_forward(self.thresh, x, self.mem)
            return spk
        return _qcfs_forward(self.thresh, x, L=self.L)


# ----------------------------------------------------------------------------
# Pure-JAX references for verification
# ----------------------------------------------------------------------------
def _ref_qcfs(x, thresh, L):
    y = jnp.clip(x / thresh, 0.0, 1.0)
    return jnp.floor(y * L + 0.5) / L * thresh


def _ref_spike(x, mem, thresh):
    mem = mem + x
    spk = (mem - thresh >= 0.0).astype(jnp.float32) * thresh
    return spk, mem - spk


if __name__ == "__main__":
    key = jax.random.PRNGKey(0)
    x = jax.random.normal(key, (2, 4, 16, 16), dtype=jnp.float32) * 4.0

    # --- T == 0 : QCFS quantization path ---
    mod0 = IF(T=0, L=8, thresh=8.0)
    y0 = mod0(x)
    jax.block_until_ready(y0)
    y0_ref = _ref_qcfs(x, 8.0, 8.0)
    assert y0.dtype == x.dtype
    assert jnp.allclose(y0, y0_ref, atol=1e-5), "QCFS mismatch"

    # --- T > 0 : spiking IF path (three timesteps, stateful membrane) ---
    mod1 = IF(T=4, L=8, thresh=8.0)
    mem_ref = jnp.zeros_like(x) + 8.0 * 0.5
    for _ in range(3):
        spk = mod1(x)
        jax.block_until_ready(spk)
        spk_ref, mem_ref = _ref_spike(x, mem_ref, 8.0)
        assert spk.dtype == x.dtype
        assert jnp.allclose(spk, spk_ref, atol=1e-5), "spike mismatch"
        assert jnp.allclose(mod1.membrane(), mem_ref, atol=1e-5), "mem mismatch"

    # --- bf16 input sanity (kernel upcasts internally, returns bf16) ---
    xb = (jax.random.normal(jax.random.PRNGKey(1), (4, 8, 16, 16)) * 4.0
          ).astype(jnp.bfloat16)
    yb = IF(T=0, L=8, thresh=8.0)(xb)
    jax.block_until_ready(yb)
    assert yb.dtype == jnp.bfloat16
    yb_ref = _ref_qcfs(xb.astype(jnp.float32), 8.0, 8.0).astype(jnp.bfloat16)
    assert jnp.allclose(yb.astype(jnp.float32), yb_ref.astype(jnp.float32),
                        atol=1e-2), "bf16 QCFS mismatch"

    print("KERNEL_OK")
</pallas_src>

<mosaic_0001>
module attributes {stable_mosaic.version = 11 : i64} {
  func.func @_qcfs_kernel(%arg0: i32, %arg1: memref<3xf32, #tpu.memory_space<smem>>, %arg2: memref<8x128xf32, #tpu.memory_space<vmem>>, %arg3: memref<8x128xf32, #tpu.memory_space<vmem>>) attributes {dimension_semantics = [#tpu.dimension_semantics<parallel>], iteration_bounds = array<i64: 2>, scalar_prefetch = 0 : i64, scratch_operands = 0 : i64, tpu.core_type = #tpu.core_type<tc>, window_params = [{transform_indices = @transform_0, window_bounds = array<i64: 3>}, {transform_indices = @transform_1, window_bounds = array<i64: 8, 128>}, {transform_indices = @transform_2, window_bounds = array<i64: 8, 128>}]} {
    %c1 = arith.constant 1 : index
    %0 = memref.load %arg1[%c1] : memref<3xf32, #tpu.memory_space<smem>>
    %c2 = arith.constant 2 : index
    %1 = memref.load %arg1[%c2] : memref<3xf32, #tpu.memory_space<smem>>
    %c0 = arith.constant 0 : index
    %c0_0 = arith.constant 0 : index
    %2 = vector.load %arg2[%c0, %c0_0] : memref<8x128xf32, #tpu.memory_space<vmem>>, vector<8x128xf32>
    %3 = vector.broadcast %0 : f32 to vector<8x128xf32>
    %4 = arith.mulf %2, %3 : vector<8x128xf32>
    %cst = arith.constant 0.000000e+00 : f32
    %cst_1 = arith.constant 1.000000e+00 : f32
    %5 = vector.broadcast %cst : f32 to vector<8x128xf32>
    %6 = arith.maximumf %5, %4 : vector<8x128xf32>
    %7 = vector.broadcast %cst_1 : f32 to vector<8x128xf32>
    %8 = arith.minimumf %7, %6 : vector<8x128xf32>
    %cst_2 = arith.constant 8.000000e+00 : f32
    %9 = vector.broadcast %cst_2 : f32 to vector<8x128xf32>
    %10 = arith.mulf %8, %9 : vector<8x128xf32>
    %cst_3 = arith.constant 5.000000e-01 : f32
    %11 = vector.broadcast %cst_3 : f32 to vector<8x128xf32>
    %12 = arith.addf %10, %11 : vector<8x128xf32>
    %13 = math.floor %12 : vector<8x128xf32>
    %14 = vector.broadcast %1 : f32 to vector<8x128xf32>
    %15 = arith.mulf %13, %14 : vector<8x128xf32>
    %c0_4 = arith.constant 0 : index
    %c0_5 = arith.constant 0 : index
    %16 = vector.load %arg3[%c0_4, %c0_5] : memref<8x128xf32, #tpu.memory_space<vmem>>, vector<8x128xf32>
    tpu.vector_store %arg3[%c0_4, %c0_5], %15 {strides = array<i32>} : memref<8x128xf32, #tpu.memory_space<vmem>>, vector<8x128xf32>,
    return
  }
  func.func @transform_0(%arg0: i32) -> i32 {
    %c0_i32 = arith.constant 0 : i32
    %c0_i32_0 = arith.constant 0 : i32
    return %c0_i32 : i32
  }
  func.func @transform_1(%arg0: i32) -> (i32, i32) {
    %c0_i32 = arith.constant 0 : i32
    %c0_i32_0 = arith.constant 0 : i32
    return %arg0, %c0_i32 : i32, i32
  }
  func.func @transform_2(%arg0: i32) -> (i32, i32) {
    %c0_i32 = arith.constant 0 : i32
    %c0_i32_0 = arith.constant 0 : i32
    return %arg0, %c0_i32 : i32, i32
  }
}

</mosaic_0001>

<llo_original>
// kernel: _qcfs_forward.1
$region0: #{_qcfs_forward.1}
  #allocation0 [shape = 'u32[]', space=smem, size = 0x4, offset = 0x4, fixed_abs, tag = 'smem constant byte address 0x4 - core index']
  #allocation1 [shape = 'u32[72,128]{1,0:T(1,128)}', space=vmem, size = 0x9000, scoped, tag = 'internal scratch']
  %s0 = inlined_call_operand.vmem [shape: f32[3], index: 0, kind: input, shape index: {}]
  %s1 = inlined_call_operand.vmem [shape: f32[16,128], index: 1, kind: input, shape index: {}]
  %s2 = inlined_call_operand.vmem [shape: f32[16,128], index: 2, kind: output, shape index: {}]
  %s3 = sld [smem:[#allocation0]]
  $region45: #{_qcfs_forward.1} parent=0
    _
  %s5 = ssub.s32 1, %s3
  %s6 = scalar_select 0, %s5, %s3
  $region1: #{_qcfs_forward.1} parent=0
    #allocation2 [shape = 'u8[512]{0}', space=smem, size = 0x200, scoped, tag = 'input window, operand 0, single buffered']
    #allocation3 [shape = 's32[2]{0}', space=sflag, size = 0x8, scoped, tag = 'scoped memory for _qcfs_forward.1']
    %7 = vsyncpa [#allocation3], 0
    loop: start=0, step=1, limit=4
    $region2: #{_qcfs_forward.1} parent=1 // loop_pre_header
      _
    $region3: #{_qcfs_forward.1} parent=1 // loop_header
      %s9 = sphi 0, %s13
      %p10 = scmp.ge.s32.totalorder %s9, 4
      %s17 = sphi 0, %s17
      %s19 = sphi 0, %s17
      %s20 = sphi 0, %s19
      %s34 = sphi 0, %s20
      %s40 = sphi 0, %s42
      %s43 = sphi 0, %s40
      %s44 = sphi 0, %s43
      %s60 = sphi 0, %s44
      %s66 = sphi 0, %s68
      %s69 = sphi 0, %s66
      %s70 = sphi 0, %s69
      %s86 = sphi 0, %s70
    $region4: #{_qcfs_forward.1} parent=1 // loop_header_branch
      %12 = sbr.rel (%p10) target = $region8
    $region5: #{_qcfs_forward.1} parent=1 // loop_body
      %s14 = ssub.s32 %s9, 1
      %s15 = ssub.s32 %s9, 2
      %s16 = sadd.s32 %s9, 1
      %s18 = sadd.s32 %s17, 1
      %p21 = scmp.eq.s32.totalorder %s9, 1
      %p22 = scmp.ne.s32.totalorder %s17, %s19
      %p23 = scmp.eq.s32.totalorder %s9, 0
      %p24 = por %p22, %p23
      %p25 = scmp.ne.s32.totalorder %s17, %s19
      %p26 = scmp.eq.s32.totalorder %s14, 1
      %p27 = por %p25, %p26
      %p28 = scmp.ne.s32.totalorder %s19, %s20
      %p29 = scmp.eq.s32.totalorder %s14, 0
      %p30 = por %p28, %p29
      %p31 = scmp.ne.s32.totalorder %s19, %s20
      %p32 = scmp.eq.s32.totalorder %s15, 1
      %p33 = por %p31, %p32
      %p35 = scmp.ne.s32.totalorder %s20, %s34
      %p36 = scmp.eq.s32.totalorder %s15, 0
      %p37 = por %p35, %p36
      %s38 = ssub.s32 %s9, %s16
      %p39 = scmp.eq.s32.totalorder %s38, 0
      %s41 = sadd.s32 %s40, 1
      %s42 = scalar_select %p39, %s40, %s41
      %p45 = pneg %p39
      %p46 = scmp.eq.s32.totalorder %s9, 1
      %p47 = por %p45, %p46
      %p48 = scmp.ne.s32.totalorder %s40, %s43
      %p49 = scmp.eq.s32.totalorder %s9, 0
      %p50 = por %p48, %p49
      %p51 = scmp.ne.s32.totalorder %s40, %s43
      %p52 = scmp.eq.s32.totalorder %s14, 1
      %p53 = por %p51, %p52
      %p54 = scmp.ne.s32.totalorder %s43, %s44
      %p55 = scmp.eq.s32.totalorder %s14, 0
      %p56 = por %p54, %p55
      %p57 = scmp.ne.s32.totalorder %s43, %s44
      %p58 = scmp.eq.s32.totalorder %s15, 1
      %p59 = por %p57, %p58
      %p61 = scmp.ne.s32.totalorder %s44, %s60
      %p62 = scmp.eq.s32.totalorder %s15, 0
      %p63 = por %p61, %p62
      %s64 = ssub.s32 %s9, %s16
      %p65 = scmp.eq.s32.totalorder %s64, 0
      %s67 = sadd.s32 %s66, 1
      %s68 = scalar_select %p65, %s66, %s67
      %p71 = pneg %p65
      %p72 = scmp.eq.s32.totalorder %s9, 1
      %p73 = por %p71, %p72
      %p74 = scmp.ne.s32.totalorder %s66, %s69
      %p75 = scmp.eq.s32.totalorder %s9, 0
      %p76 = por %p74, %p75
      %p77 = scmp.ne.s32.totalorder %s66, %s69
      %p78 = scmp.eq.s32.totalorder %s14, 1
      %p79 = por %p77, %p78
      %p80 = scmp.ne.s32.totalorder %s69, %s70
      %p81 = scmp.eq.s32.totalorder %s14, 0
      %p82 = por %p80, %p81
      %p83 = scmp.ne.s32.totalorder %s69, %s70
      %p84 = scmp.eq.s32.totalorder %s15, 1
      %p85 = por %p83, %p84
      %p87 = scmp.ne.s32.totalorder %s70, %s86
      %p88 = scmp.eq.s32.totalorder %s15, 0
      %p89 = por %p87, %p88
      %p90 = scmp.le.s32.totalorder 1, %s9
      %p91 = scmp.lt.s32.totalorder %s9, 3
      %p92 = pnand %p90, %p91
      %p93 = pneg %p92
      // Predicated region
      $region9: #{_qcfs_forward.1} parent=5 // pred_check
        _
      $region10: #{_qcfs_forward.1} parent=5 // pred_check_branch
        %95 = sbr.rel (%p92) target = $region12
      $region11: #{_qcfs_forward.1} parent=5 // pred_region
        %s96 = ssub.s32 %s9, 1
        // Predicated region
        $region13: #{_qcfs_forward.1} parent=11 // pred_check
          %p97 = pneg %p30
        $region14: #{_qcfs_forward.1} parent=11 // pred_check_branch
          %99 = sbr.rel (%p97) target = $region16
        $region15: #{_qcfs_forward.1} parent=11 // pred_region
          %101 = vsyncadd [#allocation3], 0
          %s103 = sshll.u32 %s0, 4
          %s104 = int_to_ptr.vmem [resolvable:$true] %s103
          %106 = dma.vmem_to_smem %s104, 16, [#allocation2], [#allocation3]
        $region16: #{_qcfs_forward.1} parent=11 // pred_fallthru
          _
      $region12: #{_qcfs_forward.1} parent=5 // pred_fallthru
        _
      %p107 = scmp.lt.s32.totalorder %s9, 2
      // Predicated region
      $region17: #{_qcfs_forward.1} parent=5 // pred_check
        %p108 = pneg %p107
      $region18: #{_qcfs_forward.1} parent=5 // pred_check_branch
        %110 = sbr.rel (%p108) target = $region20
      $region19: #{_qcfs_forward.1} parent=5 // pred_region
        // Predicated region
        $region21: #{_qcfs_forward.1} parent=19 // pred_check
          %p111 = pneg %p50
        $region22: #{_qcfs_forward.1} parent=19 // pred_check_branch
          %113 = sbr.rel (%p111) target = $region24
        $region23: #{_qcfs_forward.1} parent=19 // pred_region
          %p114 = scmp.lt.s32.totalorder %s9, 1
          %s115 = scalar_select %p114, %s9, 1
          %s116 = smul.addr %s115, 8
          %s117 = scalar_lea.vmem %s1, %s116
        $region24: #{_qcfs_forward.1} parent=19 // pred_fallthru
          _
      $region20: #{_qcfs_forward.1} parent=5 // pred_fallthru
        _
      %p118 = scmp.le.s32.totalorder 1, %s9
      %p119 = scmp.lt.s32.totalorder %s9, 3
      %p120 = pnand %p118, %p119
      %p121 = pneg %p120
      // Predicated region
      $region25: #{_qcfs_forward.1} parent=5 // pred_check
        _
      $region26: #{_qcfs_forward.1} parent=5 // pred_check_branch
        %123 = sbr.rel (%p120) target = $region28
      $region27: #{_qcfs_forward.1} parent=5 // pred_region
        %s124 = ssub.s32 %s9, 1
        // Predicated region
        $region29: #{_qcfs_forward.1} parent=27 // pred_check
          %p125 = pneg %p30
        $region30: #{_qcfs_forward.1} parent=27 // pred_check_branch
          %127 = sbr.rel (%p125) target = $region32
        $region31: #{_qcfs_forward.1} parent=27 // pred_region
          %129 = dma.done [#allocation3], 16
        $region32: #{_qcfs_forward.1} parent=27 // pred_fallthru
          _
        %130 = sfence
        %p131 = pneg %p30
        %p132 = pneg %p27
        %p133 = scmp.lt.s32.totalorder %s14, 1
        %s134 = scalar_select %p133, %s14, 1
        %s135 = smul.addr %s134, 8
        %s136 = scalar_lea.vmem %s1, %s135
        %p137 = pneg %p56
        %p138 = pneg %p53
        %p139 = pneg %p82
        %p140 = pneg %p79
        %p141 = scmp.lt.s32.totalorder %s14, 1
        %s142 = scalar_select %p141, %s14, 1
        %s143 = smul.addr %s142, 8
        %s144 = scalar_lea.vmem %s2, %s143
        %p145 = scmp.lt.s32.totalorder %s14, 1
        %s146 = scalar_select %p145, %s14, 1
        %s147 = smul.addr %s146, 8
        %s148 = scalar_lea.vmem %s1, %s147
        %p149 = scmp.lt.s32.totalorder %s14, 1
        %s150 = scalar_select %p149, %s14, 1
        %s151 = smul.addr %s150, 8
        %s152 = scalar_lea.vmem %s2, %s151
        %s153 = sld [smem:[#allocation2 + $0x1]]
        %s154 = sld [smem:[#allocation2 + $0x2]]
        %v155 = vld [vmem:[%s148] sm:$0xff]
        %v156 = vstv %s153
        %v157 = vmul.f32 %v155, %v156
        %v158 = vmax.f32 %v157, 0.0
        %v159 = vmin.f32 %v158, 1.0
        %v160 = vmul.f32 %v159, 8.0
        %v161 = vadd.f32 %v160, 0.5
        %v162 = vfloor.f32 %v161
        %v163 = vstv %s154
        %v164 = vmul.f32 %v162, %v163
        %165 = vst [vmem:[%s152] sm:$0xff] %v164
        %p166 = scmp.lt.s32.totalorder %s14, 1
        %s167 = scalar_select %p166, %s14, 1
        %s168 = smul.addr %s167, 8
        %s169 = scalar_lea.vmem %s2, %s168
        // Predicated region
        $region33: #{_qcfs_forward.1} parent=27 // pred_check
          %p170 = pneg %p79
        $region34: #{_qcfs_forward.1} parent=27 // pred_check_branch
          %172 = sbr.rel (%p170) target = $region36
        $region35: #{_qcfs_forward.1} parent=27 // pred_region
          _
        $region36: #{_qcfs_forward.1} parent=27 // pred_fallthru
          _
      $region28: #{_qcfs_forward.1} parent=5 // pred_fallthru
        _
      %p173 = scmp.le.s32.totalorder 2, %s9
      // Predicated region
      $region37: #{_qcfs_forward.1} parent=5 // pred_check
        %p174 = pneg %p173
      $region38: #{_qcfs_forward.1} parent=5 // pred_check_branch
        %176 = sbr.rel (%p174) target = $region40
      $region39: #{_qcfs_forward.1} parent=5 // pred_region
        %s177 = ssub.s32 %s9, 2
        // Predicated region
        $region41: #{_qcfs_forward.1} parent=39 // pred_check
          %p178 = pneg %p85
        $region42: #{_qcfs_forward.1} parent=39 // pred_check_branch
          %180 = sbr.rel (%p178) target = $region44
        $region43: #{_qcfs_forward.1} parent=39 // pred_region
          %p181 = scmp.lt.s32.totalorder %s15, 1
          %s182 = scalar_select %p181, %s15, 1
          %s183 = smul.addr %s182, 8
          %s184 = scalar_lea.vmem %s2, %s183
        $region44: #{_qcfs_forward.1} parent=39 // pred_fallthru
          _
      $region40: #{_qcfs_forward.1} parent=5 // pred_fallthru
        _
    $region6: #{_qcfs_forward.1} parent=1 // loop_footer
      %s13 = sadd.s32 1, %s9
    $region7: #{_qcfs_forward.1} parent=1 // loop_footer_branch
      %8 = sbr.rel target = $region3
    $region8: #{_qcfs_forward.1} parent=1 // loop_exit
      _
    %185 = vsyncpa [#allocation3], 1
    %s186 = scalar_lea.sflag [#allocation3], 1
    %187 = vsyncpa %s186, 1

</llo_original>
